<compile_context>
chip_gen: v6e
topology: v6e:2x2x1
jax: 0.10.0
libtpu: 0.0.40
codegen_flags: <defaults>
</compile_context>

<pallas_src>
import jax
import jax.numpy as jnp
from jax import lax
from jax.experimental import pallas as pl
from jax.experimental.pallas import tpu as pltpu

D_IN, D_H1, D_H2, D_OUT = 5, 4, 4, 3

LANES = 128            # vreg lane width
CHUNK = 8              # sublane rows per inner step (one (8,128) vreg per feature)
UNROLL = 2             # fori_loop unroll factor
ROW_QUANT = CHUNK * UNROLL   # tile row granularity


def mlp_kernel(x_ref, w1_ref, b1_ref, w2_ref, b2_ref, w3_ref, b3_ref, o_ref):
    """Fused MLP on one (D_IN, SB, 128) batch tile.

    The batch occupies the (sublane, lane) plane, so every VALU/EUP op works
    on dense (CHUNK, 128) vregs.  Each 5/4/3-wide "matmul" is an unrolled
    scalar-broadcast FMA chain on the VPU (MXU stays idle); the sigmoid affine
    constants were folded into the weights in the wrapper so the kernel only
    evaluates bare tanh (EUP).
    """
    # Hoist all SMEM scalar reads out of the hot loop.
    w1 = [[w1_ref[k, j] for j in range(D_H1)] for k in range(D_IN)]
    b1 = [b1_ref[j] for j in range(D_H1)]
    w2 = [[w2_ref[k, j] for j in range(D_H2)] for k in range(D_H1)]
    b2 = [b2_ref[j] for j in range(D_H2)]
    w3 = [[w3_ref[k, j] for j in range(D_OUT)] for k in range(D_H2)]
    b3 = [b3_ref[j] for j in range(D_OUT)]

    n_chunks = x_ref.shape[1] // CHUNK

    def body(c, carry):
        r = pl.multiple_of(c * CHUNK, CHUNK)
        # ~13 live (CHUNK,128) vregs (5 x-rows + 4 t1 + 4 t2) + temps:
        # register resident, no full-tile intermediates.
        xs = [x_ref[k, pl.ds(r, CHUNK), :] for k in range(D_IN)]

        # Layer 1: t1 = tanh(x @ W1' + b1')   (sigmoid scale folded into W1', b1')
        t1 = []
        for j in range(D_H1):
            z = xs[0] * w1[0][j]
            for k in range(1, D_IN):
                z = z + xs[k] * w1[k][j]
            t1.append(jnp.tanh(z + b1[j]))

        # Layer 2: t2 = tanh(t1 @ W2' + b2')
        t2 = []
        for j in range(D_H2):
            z = t1[0] * w2[0][j]
            for k in range(1, D_H1):
                z = z + t1[k] * w2[k][j]
            t2.append(jnp.tanh(z + b2[j]))

        # Layer 3: y = t2 @ W3' + b3'   (dense, unmasked (CHUNK,128) stores)
        for j in range(D_OUT):
            z = t2[0] * w3[0][j]
            for k in range(1, D_H2):
                z = z + t2[k] * w3[k][j]
            o_ref[j, pl.ds(r, CHUNK), :] = (z + b3[j]).astype(o_ref.dtype)
        return carry

    lax.fori_loop(0, n_chunks, body, 0, unroll=UNROLL)


def _cdiv(a, b):
    return -(-a // b)


def _round_up(n, m):
    return _cdiv(n, m) * m


def _fold_sigmoid_into_params(params):
    """sigmoid(z) = 0.5*tanh(z/2) + 0.5.  Fold the /2 into the preceding
    weights/bias and the 0.5*(.)+0.5 into the following layer, so the kernel
    computes:  t1 = tanh(x@W1'+b1'); t2 = tanh(t1@W2'+b2'); y = t2@W3'+b3'."""
    w1, b1 = params["w1"], params["b1"]
    w2, b2 = params["w2"], params["b2"]
    w3, b3 = params["w3"], params["b3"]
    w1f = 0.5 * w1
    b1f = 0.5 * b1
    w2f = 0.25 * w2
    b2f = 0.25 * jnp.sum(w2, axis=0) + 0.5 * b2
    w3f = 0.5 * w3
    b3f = 0.5 * jnp.sum(w3, axis=0) + b3
    return w1f, b1f, w2f, b2f, w3f, b3f


def mlp_forward_feature_major(xt, params, *, block_b=256 * 1024):
    """Feature-major entry point: xt (5, B) f32 -> (3, B) f32.

    No HBM relayouts; preferred for large batches (keep the surrounding model
    in (features, batch) layout).  block_b = max batch elements per grid step.
    """
    assert xt.shape[0] == D_IN
    B = xt.shape[1]

    # ---- batch tiling: rows of 128 lanes, ROW_QUANT-aligned tiles ----------
    rows_needed = _cdiv(B, LANES)
    max_rows = max(ROW_QUANT, (block_b // LANES) // ROW_QUANT * ROW_QUANT)
    n_tiles = max(1, _cdiv(rows_needed, max_rows))
    rows_tile = _round_up(_cdiv(rows_needed, n_tiles), ROW_QUANT)
    rows_pad = rows_tile * n_tiles
    b_pad = rows_pad * LANES

    if b_pad != B:
        xt = jnp.pad(xt, ((0, 0), (0, b_pad - B)))
    x3 = xt.reshape(D_IN, rows_pad, LANES)

    w1f, b1f, w2f, b2f, w3f, b3f = _fold_sigmoid_into_params(params)

    smem = pl.BlockSpec(memory_space=pltpu.MemorySpace.SMEM)

    # Double-buffered in+out footprint; 32 MiB floor is safe on v5e/v6e/v7x.
    # (v7x: keep default block_b so this stays under its 64 MiB VMEM; on
    #  v6e/v5e block_b can be raised toward 512K-1M elements per step.)
    tile_bytes = 4 * (D_IN + D_OUT) * rows_tile * LANES * 2
    vmem_limit = int(max(32 << 20, tile_bytes + (8 << 20)))

    param_bytes = 4 * sum(int(p.size) for p in (w1f, b1f, w2f, b2f, w3f, b3f))
    cost = pl.CostEstimate(
        flops=2 * b_pad * (D_IN * D_H1 + D_H1 * D_H2 + D_H2 * D_OUT),
        transcendentals=b_pad * (D_H1 + D_H2),
        bytes_accessed=4 * b_pad * (D_IN + D_OUT) + param_bytes,
    )

    out3 = pl.pallas_call(
        mlp_kernel,
        out_shape=jax.ShapeDtypeStruct((D_OUT, rows_pad, LANES), jnp.float32),
        grid=(n_tiles,),
        in_specs=[
            pl.BlockSpec((D_IN, rows_tile, LANES), lambda i: (0, i, 0)),  # x tile
            smem, smem,   # w1', b1'
            smem, smem,   # w2', b2'
            smem, smem,   # w3', b3'
        ],
        out_specs=pl.BlockSpec((D_OUT, rows_tile, LANES), lambda i: (0, i, 0)),
        compiler_params=pltpu.CompilerParams(
            dimension_semantics=("parallel",),
            vmem_limit_bytes=vmem_limit,
        ),
        cost_estimate=cost,
    )(x3, w1f, b1f, w2f, b2f, w3f, b3f)

    return out3.reshape(D_OUT, b_pad)[:, :B]


def mlp_forward(x, params, *, block_b=256 * 1024):
    """Batch-major (PyTorch-style) API: x (B, 5) f32 -> (B, 3) f32.

    NOTE: this wrapper performs two HBM relayouts (x.T in, y.T out) purely for
    API compatibility with the nn.Module; large-batch callers should use
    mlp_forward_feature_major directly and keep a feature-major layout.
    """
    yt = mlp_forward_feature_major(x.T, params, block_b=block_b)
    return yt.T


def init_params(key):
    """Deterministic init mirroring nn.Linear shapes.

    PyTorch stores weight as (out, in); we store the transpose (in, out) so
    the math is x @ W + b (identical to x @ weight.T + bias)."""
    ks = jax.random.split(key, 6)

    def linear(kw, kb, fan_in, fan_out):
        bound = 1.0 / jnp.sqrt(jnp.float32(fan_in))
        w = jax.random.uniform(kw, (fan_in, fan_out), jnp.float32, -bound, bound)
        b = jax.random.uniform(kb, (fan_out,), jnp.float32, -bound, bound)
        return w, b

    w1, b1 = linear(ks[0], ks[1], D_IN, D_H1)
    w2, b2 = linear(ks[2], ks[3], D_H1, D_H2)
    w3, b3 = linear(ks[4], ks[5], D_H2, D_OUT)
    return {"w1": w1, "b1": b1, "w2": w2, "b2": b2, "w3": w3, "b3": b3}


def mlp_reference(x, p):
    h1 = jax.nn.sigmoid(x @ p["w1"] + p["b1"])
    h2 = jax.nn.sigmoid(h1 @ p["w2"] + p["b2"])
    return h2 @ p["w3"] + p["b3"]


if __name__ == "__main__":
    key = jax.random.PRNGKey(0)
    kx, kp, kx2 = jax.random.split(key, 3)
    params = init_params(kp)

    # Small case matching the module (batch=2, features=5).
    batch = 2
    x = jax.random.normal(kx, (batch, 5), dtype=jnp.float32)
    y = jax.block_until_ready(mlp_forward(x, params))
    y_ref = mlp_reference(x, params)
    assert y.shape == (batch, 3)
    assert jnp.allclose(y, y_ref, atol=1e-5, rtol=1e-5)

    # Multi-tile case exercising the batch grid, tile quantization and padding
    # clip (block_b small enough to force several grid steps).
    batch2 = 5000
    x2 = jax.random.normal(kx2, (batch2, 5), dtype=jnp.float32)
    y2 = jax.block_until_ready(mlp_forward(x2, params, block_b=16 * LANES))
    y2_ref = mlp_reference(x2, params)
    assert y2.shape == (batch2, 3)
    assert jnp.allclose(y2, y2_ref, atol=1e-5, rtol=1e-5)

    # Feature-major fast path (no wrapper transposes).
    y3 = jax.block_until_ready(mlp_forward_feature_major(x2.T, params))
    assert y3.shape == (3, batch2)
    assert jnp.allclose(y3.T, y2_ref, atol=1e-5, rtol=1e-5)

    print("KERNEL_OK")
</pallas_src>

<mosaic_0001>
module attributes {stable_mosaic.version = 11 : i64} {
  func.func @mlp_kernel(%arg0: i32, %arg1: memref<5x16x128xf32, #tpu.memory_space<vmem>>, %arg2: memref<5x4xf32, #tpu.memory_space<smem>>, %arg3: memref<4xf32, #tpu.memory_space<smem>>, %arg4: memref<4x4xf32, #tpu.memory_space<smem>>, %arg5: memref<4xf32, #tpu.memory_space<smem>>, %arg6: memref<4x3xf32, #tpu.memory_space<smem>>, %arg7: memref<3xf32, #tpu.memory_space<smem>>, %arg8: memref<3x16x128xf32, #tpu.memory_space<vmem>>) attributes {dimension_semantics = [#tpu.dimension_semantics<parallel>], iteration_bounds = array<i64: 1>, scalar_prefetch = 0 : i64, scratch_operands = 0 : i64, tpu.core_type = #tpu.core_type<tc>, window_params = [{transform_indices = @transform_0, window_bounds = array<i64: 5, 16, 128>}, {transform_indices = @transform_1, window_bounds = array<i64: 5, 4>}, {transform_indices = @transform_2, window_bounds = array<i64: 4>}, {transform_indices = @transform_3, window_bounds = array<i64: 4, 4>}, {transform_indices = @transform_4, window_bounds = array<i64: 4>}, {transform_indices = @transform_5, window_bounds = array<i64: 4, 3>}, {transform_indices = @transform_6, window_bounds = array<i64: 3>}, {transform_indices = @transform_7, window_bounds = array<i64: 3, 16, 128>}]} {
    %c0 = arith.constant 0 : index
    %c0_0 = arith.constant 0 : index
    %0 = memref.load %arg2[%c0, %c0_0] : memref<5x4xf32, #tpu.memory_space<smem>>
    %c0_1 = arith.constant 0 : index
    %c1 = arith.constant 1 : index
    %1 = memref.load %arg2[%c0_1, %c1] : memref<5x4xf32, #tpu.memory_space<smem>>
    %c0_2 = arith.constant 0 : index
    %c2 = arith.constant 2 : index
    %2 = memref.load %arg2[%c0_2, %c2] : memref<5x4xf32, #tpu.memory_space<smem>>
    %c0_3 = arith.constant 0 : index
    %c3 = arith.constant 3 : index
    %3 = memref.load %arg2[%c0_3, %c3] : memref<5x4xf32, #tpu.memory_space<smem>>
    %c1_4 = arith.constant 1 : index
    %c0_5 = arith.constant 0 : index
    %4 = memref.load %arg2[%c1_4, %c0_5] : memref<5x4xf32, #tpu.memory_space<smem>>
    %c1_6 = arith.constant 1 : index
    %c1_7 = arith.constant 1 : index
    %5 = memref.load %arg2[%c1_6, %c1_7] : memref<5x4xf32, #tpu.memory_space<smem>>
    %c1_8 = arith.constant 1 : index
    %c2_9 = arith.constant 2 : index
    %6 = memref.load %arg2[%c1_8, %c2_9] : memref<5x4xf32, #tpu.memory_space<smem>>
    %c1_10 = arith.constant 1 : index
    %c3_11 = arith.constant 3 : index
    %7 = memref.load %arg2[%c1_10, %c3_11] : memref<5x4xf32, #tpu.memory_space<smem>>
    %c2_12 = arith.constant 2 : index
    %c0_13 = arith.constant 0 : index
    %8 = memref.load %arg2[%c2_12, %c0_13] : memref<5x4xf32, #tpu.memory_space<smem>>
    %c2_14 = arith.constant 2 : index
    %c1_15 = arith.constant 1 : index
    %9 = memref.load %arg2[%c2_14, %c1_15] : memref<5x4xf32, #tpu.memory_space<smem>>
    %c2_16 = arith.constant 2 : index
    %c2_17 = arith.constant 2 : index
    %10 = memref.load %arg2[%c2_16, %c2_17] : memref<5x4xf32, #tpu.memory_space<smem>>
    %c2_18 = arith.constant 2 : index
    %c3_19 = arith.constant 3 : index
    %11 = memref.load %arg2[%c2_18, %c3_19] : memref<5x4xf32, #tpu.memory_space<smem>>
    %c3_20 = arith.constant 3 : index
    %c0_21 = arith.constant 0 : index
    %12 = memref.load %arg2[%c3_20, %c0_21] : memref<5x4xf32, #tpu.memory_space<smem>>
    %c3_22 = arith.constant 3 : index
    %c1_23 = arith.constant 1 : index
    %13 = memref.load %arg2[%c3_22, %c1_23] : memref<5x4xf32, #tpu.memory_space<smem>>
    %c3_24 = arith.constant 3 : index
    %c2_25 = arith.constant 2 : index
    %14 = memref.load %arg2[%c3_24, %c2_25] : memref<5x4xf32, #tpu.memory_space<smem>>
    %c3_26 = arith.constant 3 : index
    %c3_27 = arith.constant 3 : index
    %15 = memref.load %arg2[%c3_26, %c3_27] : memref<5x4xf32, #tpu.memory_space<smem>>
    %c4 = arith.constant 4 : index
    %c0_28 = arith.constant 0 : index
    %16 = memref.load %arg2[%c4, %c0_28] : memref<5x4xf32, #tpu.memory_space<smem>>
    %c4_29 = arith.constant 4 : index
    %c1_30 = arith.constant 1 : index
    %17 = memref.load %arg2[%c4_29, %c1_30] : memref<5x4xf32, #tpu.memory_space<smem>>
    %c4_31 = arith.constant 4 : index
    %c2_32 = arith.constant 2 : index
    %18 = memref.load %arg2[%c4_31, %c2_32] : memref<5x4xf32, #tpu.memory_space<smem>>
    %c4_33 = arith.constant 4 : index
    %c3_34 = arith.constant 3 : index
    %19 = memref.load %arg2[%c4_33, %c3_34] : memref<5x4xf32, #tpu.memory_space<smem>>
    %c0_35 = arith.constant 0 : index
    %20 = memref.load %arg3[%c0_35] : memref<4xf32, #tpu.memory_space<smem>>
    %c1_36 = arith.constant 1 : index
    %21 = memref.load %arg3[%c1_36] : memref<4xf32, #tpu.memory_space<smem>>
    %c2_37 = arith.constant 2 : index
    %22 = memref.load %arg3[%c2_37] : memref<4xf32, #tpu.memory_space<smem>>
    %c3_38 = arith.constant 3 : index
    %23 = memref.load %arg3[%c3_38] : memref<4xf32, #tpu.memory_space<smem>>
    %c0_39 = arith.constant 0 : index
    %c0_40 = arith.constant 0 : index
    %24 = memref.load %arg4[%c0_39, %c0_40] : memref<4x4xf32, #tpu.memory_space<smem>>
    %c0_41 = arith.constant 0 : index
    %c1_42 = arith.constant 1 : index
    %25 = memref.load %arg4[%c0_41, %c1_42] : memref<4x4xf32, #tpu.memory_space<smem>>
    %c0_43 = arith.constant 0 : index
    %c2_44 = arith.constant 2 : index
    %26 = memref.load %arg4[%c0_43, %c2_44] : memref<4x4xf32, #tpu.memory_space<smem>>
    %c0_45 = arith.constant 0 : index
    %c3_46 = arith.constant 3 : index
    %27 = memref.load %arg4[%c0_45, %c3_46] : memref<4x4xf32, #tpu.memory_space<smem>>
    %c1_47 = arith.constant 1 : index
    %c0_48 = arith.constant 0 : index
    %28 = memref.load %arg4[%c1_47, %c0_48] : memref<4x4xf32, #tpu.memory_space<smem>>
    %c1_49 = arith.constant 1 : index
    %c1_50 = arith.constant 1 : index
    %29 = memref.load %arg4[%c1_49, %c1_50] : memref<4x4xf32, #tpu.memory_space<smem>>
    %c1_51 = arith.constant 1 : index
    %c2_52 = arith.constant 2 : index
    %30 = memref.load %arg4[%c1_51, %c2_52] : memref<4x4xf32, #tpu.memory_space<smem>>
    %c1_53 = arith.constant 1 : index
    %c3_54 = arith.constant 3 : index
    %31 = memref.load %arg4[%c1_53, %c3_54] : memref<4x4xf32, #tpu.memory_space<smem>>
    %c2_55 = arith.constant 2 : index
    %c0_56 = arith.constant 0 : index
    %32 = memref.load %arg4[%c2_55, %c0_56] : memref<4x4xf32, #tpu.memory_space<smem>>
    %c2_57 = arith.constant 2 : index
    %c1_58 = arith.constant 1 : index
    %33 = memref.load %arg4[%c2_57, %c1_58] : memref<4x4xf32, #tpu.memory_space<smem>>
    %c2_59 = arith.constant 2 : index
    %c2_60 = arith.constant 2 : index
    %34 = memref.load %arg4[%c2_59, %c2_60] : memref<4x4xf32, #tpu.memory_space<smem>>
    %c2_61 = arith.constant 2 : index
    %c3_62 = arith.constant 3 : index
    %35 = memref.load %arg4[%c2_61, %c3_62] : memref<4x4xf32, #tpu.memory_space<smem>>
    %c3_63 = arith.constant 3 : index
    %c0_64 = arith.constant 0 : index
    %36 = memref.load %arg4[%c3_63, %c0_64] : memref<4x4xf32, #tpu.memory_space<smem>>
    %c3_65 = arith.constant 3 : index
    %c1_66 = arith.constant 1 : index
    %37 = memref.load %arg4[%c3_65, %c1_66] : memref<4x4xf32, #tpu.memory_space<smem>>
    %c3_67 = arith.constant 3 : index
    %c2_68 = arith.constant 2 : index
    %38 = memref.load %arg4[%c3_67, %c2_68] : memref<4x4xf32, #tpu.memory_space<smem>>
    %c3_69 = arith.constant 3 : index
    %c3_70 = arith.constant 3 : index
    %39 = memref.load %arg4[%c3_69, %c3_70] : memref<4x4xf32, #tpu.memory_space<smem>>
    %c0_71 = arith.constant 0 : index
    %40 = memref.load %arg5[%c0_71] : memref<4xf32, #tpu.memory_space<smem>>
    %c1_72 = arith.constant 1 : index
    %41 = memref.load %arg5[%c1_72] : memref<4xf32, #tpu.memory_space<smem>>
    %c2_73 = arith.constant 2 : index
    %42 = memref.load %arg5[%c2_73] : memref<4xf32, #tpu.memory_space<smem>>
    %c3_74 = arith.constant 3 : index
    %43 = memref.load %arg5[%c3_74] : memref<4xf32, #tpu.memory_space<smem>>
    %c0_75 = arith.constant 0 : index
    %c0_76 = arith.constant 0 : index
    %44 = memref.load %arg6[%c0_75, %c0_76] : memref<4x3xf32, #tpu.memory_space<smem>>
    %c0_77 = arith.constant 0 : index
    %c1_78 = arith.constant 1 : index
    %45 = memref.load %arg6[%c0_77, %c1_78] : memref<4x3xf32, #tpu.memory_space<smem>>
    %c0_79 = arith.constant 0 : index
    %c2_80 = arith.constant 2 : index
    %46 = memref.load %arg6[%c0_79, %c2_80] : memref<4x3xf32, #tpu.memory_space<smem>>
    %c1_81 = arith.constant 1 : index
    %c0_82 = arith.constant 0 : index
    %47 = memref.load %arg6[%c1_81, %c0_82] : memref<4x3xf32, #tpu.memory_space<smem>>
    %c1_83 = arith.constant 1 : index
    %c1_84 = arith.constant 1 : index
    %48 = memref.load %arg6[%c1_83, %c1_84] : memref<4x3xf32, #tpu.memory_space<smem>>
    %c1_85 = arith.constant 1 : index
    %c2_86 = arith.constant 2 : index
    %49 = memref.load %arg6[%c1_85, %c2_86] : memref<4x3xf32, #tpu.memory_space<smem>>
    %c2_87 = arith.constant 2 : index
    %c0_88 = arith.constant 0 : index
    %50 = memref.load %arg6[%c2_87, %c0_88] : memref<4x3xf32, #tpu.memory_space<smem>>
    %c2_89 = arith.constant 2 : index
    %c1_90 = arith.constant 1 : index
    %51 = memref.load %arg6[%c2_89, %c1_90] : memref<4x3xf32, #tpu.memory_space<smem>>
    %c2_91 = arith.constant 2 : index
    %c2_92 = arith.constant 2 : index
    %52 = memref.load %arg6[%c2_91, %c2_92] : memref<4x3xf32, #tpu.memory_space<smem>>
    %c3_93 = arith.constant 3 : index
    %c0_94 = arith.constant 0 : index
    %53 = memref.load %arg6[%c3_93, %c0_94] : memref<4x3xf32, #tpu.memory_space<smem>>
    %c3_95 = arith.constant 3 : index
    %c1_96 = arith.constant 1 : index
    %54 = memref.load %arg6[%c3_95, %c1_96] : memref<4x3xf32, #tpu.memory_space<smem>>
    %c3_97 = arith.constant 3 : index
    %c2_98 = arith.constant 2 : index
    %55 = memref.load %arg6[%c3_97, %c2_98] : memref<4x3xf32, #tpu.memory_space<smem>>
    %c0_99 = arith.constant 0 : index
    %56 = memref.load %arg7[%c0_99] : memref<3xf32, #tpu.memory_space<smem>>
    %c1_100 = arith.constant 1 : index
    %57 = memref.load %arg7[%c1_100] : memref<3xf32, #tpu.memory_space<smem>>
    %c2_101 = arith.constant 2 : index
    %58 = memref.load %arg7[%c2_101] : memref<3xf32, #tpu.memory_space<smem>>
    %c0_i32 = arith.constant 0 : i32
    %c8_i32 = arith.constant 8 : i32
    %59 = arith.muli %c0_i32, %c8_i32 : i32
    %60 = tpu.assume_multiple %59, 8 : i32
    %c0_102 = arith.constant 0 : index
    %61 = arith.index_cast %60 : i32 to index
    %c0_103 = arith.constant 0 : index
    %62 = vector.load %arg1[%c0_102, %61, %c0_103] : memref<5x16x128xf32, #tpu.memory_space<vmem>>, vector<1x8x128xf32>
    %63 = vector.shape_cast %62 : vector<1x8x128xf32> to vector<8x128xf32>
    %c1_104 = arith.constant 1 : index
    %64 = arith.index_cast %60 : i32 to index
    %c0_105 = arith.constant 0 : index
    %65 = vector.load %arg1[%c1_104, %64, %c0_105] : memref<5x16x128xf32, #tpu.memory_space<vmem>>, vector<1x8x128xf32>
    %66 = vector.shape_cast %65 : vector<1x8x128xf32> to vector<8x128xf32>
    %c2_106 = arith.constant 2 : index
    %67 = arith.index_cast %60 : i32 to index
    %c0_107 = arith.constant 0 : index
    %68 = vector.load %arg1[%c2_106, %67, %c0_107] : memref<5x16x128xf32, #tpu.memory_space<vmem>>, vector<1x8x128xf32>
    %69 = vector.shape_cast %68 : vector<1x8x128xf32> to vector<8x128xf32>
    %c3_108 = arith.constant 3 : index
    %70 = arith.index_cast %60 : i32 to index
    %c0_109 = arith.constant 0 : index
    %71 = vector.load %arg1[%c3_108, %70, %c0_109] : memref<5x16x128xf32, #tpu.memory_space<vmem>>, vector<1x8x128xf32>
    %72 = vector.shape_cast %71 : vector<1x8x128xf32> to vector<8x128xf32>
    %c4_110 = arith.constant 4 : index
    %73 = arith.index_cast %60 : i32 to index
    %c0_111 = arith.constant 0 : index
    %74 = vector.load %arg1[%c4_110, %73, %c0_111] : memref<5x16x128xf32, #tpu.memory_space<vmem>>, vector<1x8x128xf32>
    %75 = vector.shape_cast %74 : vector<1x8x128xf32> to vector<8x128xf32>
    %76 = vector.broadcast %0 : f32 to vector<8x128xf32>
    %77 = arith.mulf %63, %76 : vector<8x128xf32>
    %78 = vector.broadcast %4 : f32 to vector<8x128xf32>
    %79 = arith.mulf %66, %78 : vector<8x128xf32>
    %80 = arith.addf %77, %79 : vector<8x128xf32>
    %81 = vector.broadcast %8 : f32 to vector<8x128xf32>
    %82 = arith.mulf %69, %81 : vector<8x128xf32>
    %83 = arith.addf %80, %82 : vector<8x128xf32>
    %84 = vector.broadcast %12 : f32 to vector<8x128xf32>
    %85 = arith.mulf %72, %84 : vector<8x128xf32>
    %86 = arith.addf %83, %85 : vector<8x128xf32>
    %87 = vector.broadcast %16 : f32 to vector<8x128xf32>
    %88 = arith.mulf %75, %87 : vector<8x128xf32>
    %89 = arith.addf %86, %88 : vector<8x128xf32>
    %90 = vector.broadcast %20 : f32 to vector<8x128xf32>
    %91 = arith.addf %89, %90 : vector<8x128xf32>
    %92 = math.tanh %91 : vector<8x128xf32>
    %93 = vector.broadcast %1 : f32 to vector<8x128xf32>
    %94 = arith.mulf %63, %93 : vector<8x128xf32>
    %95 = vector.broadcast %5 : f32 to vector<8x128xf32>
    %96 = arith.mulf %66, %95 : vector<8x128xf32>
    %97 = arith.addf %94, %96 : vector<8x128xf32>
    %98 = vector.broadcast %9 : f32 to vector<8x128xf32>
    %99 = arith.mulf %69, %98 : vector<8x128xf32>
    %100 = arith.addf %97, %99 : vector<8x128xf32>
    %101 = vector.broadcast %13 : f32 to vector<8x128xf32>
    %102 = arith.mulf %72, %101 : vector<8x128xf32>
    %103 = arith.addf %100, %102 : vector<8x128xf32>
    %104 = vector.broadcast %17 : f32 to vector<8x128xf32>
    %105 = arith.mulf %75, %104 : vector<8x128xf32>
    %106 = arith.addf %103, %105 : vector<8x128xf32>
    %107 = vector.broadcast %21 : f32 to vector<8x128xf32>
    %108 = arith.addf %106, %107 : vector<8x128xf32>
    %109 = math.tanh %108 : vector<8x128xf32>
    %110 = vector.broadcast %2 : f32 to vector<8x128xf32>
    %111 = arith.mulf %63, %110 : vector<8x128xf32>
    %112 = vector.broadcast %6 : f32 to vector<8x128xf32>
    %113 = arith.mulf %66, %112 : vector<8x128xf32>
    %114 = arith.addf %111, %113 : vector<8x128xf32>
    %115 = vector.broadcast %10 : f32 to vector<8x128xf32>
    %116 = arith.mulf %69, %115 : vector<8x128xf32>
    %117 = arith.addf %114, %116 : vector<8x128xf32>
    %118 = vector.broadcast %14 : f32 to vector<8x128xf32>
    %119 = arith.mulf %72, %118 : vector<8x128xf32>
    %120 = arith.addf %117, %119 : vector<8x128xf32>
    %121 = vector.broadcast %18 : f32 to vector<8x128xf32>
    %122 = arith.mulf %75, %121 : vector<8x128xf32>
    %123 = arith.addf %120, %122 : vector<8x128xf32>
    %124 = vector.broadcast %22 : f32 to vector<8x128xf32>
    %125 = arith.addf %123, %124 : vector<8x128xf32>
    %126 = math.tanh %125 : vector<8x128xf32>
    %127 = vector.broadcast %3 : f32 to vector<8x128xf32>
    %128 = arith.mulf %63, %127 : vector<8x128xf32>
    %129 = vector.broadcast %7 : f32 to vector<8x128xf32>
    %130 = arith.mulf %66, %129 : vector<8x128xf32>
    %131 = arith.addf %128, %130 : vector<8x128xf32>
    %132 = vector.broadcast %11 : f32 to vector<8x128xf32>
    %133 = arith.mulf %69, %132 : vector<8x128xf32>
    %134 = arith.addf %131, %133 : vector<8x128xf32>
    %135 = vector.broadcast %15 : f32 to vector<8x128xf32>
    %136 = arith.mulf %72, %135 : vector<8x128xf32>
    %137 = arith.addf %134, %136 : vector<8x128xf32>
    %138 = vector.broadcast %19 : f32 to vector<8x128xf32>
    %139 = arith.mulf %75, %138 : vector<8x128xf32>
    %140 = arith.addf %137, %139 : vector<8x128xf32>
    %141 = vector.broadcast %23 : f32 to vector<8x128xf32>
    %142 = arith.addf %140, %141 : vector<8x128xf32>
    %143 = math.tanh %142 : vector<8x128xf32>
    %144 = vector.broadcast %24 : f32 to vector<8x128xf32>
    %145 = arith.mulf %92, %144 : vector<8x128xf32>
    %146 = vector.broadcast %28 : f32 to vector<8x128xf32>
    %147 = arith.mulf %109, %146 : vector<8x128xf32>
    %148 = arith.addf %145, %147 : vector<8x128xf32>
    %149 = vector.broadcast %32 : f32 to vector<8x128xf32>
    %150 = arith.mulf %126, %149 : vector<8x128xf32>
    %151 = arith.addf %148, %150 : vector<8x128xf32>
    %152 = vector.broadcast %36 : f32 to vector<8x128xf32>
    %153 = arith.mulf %143, %152 : vector<8x128xf32>
    %154 = arith.addf %151, %153 : vector<8x128xf32>
    %155 = vector.broadcast %40 : f32 to vector<8x128xf32>
    %156 = arith.addf %154, %155 : vector<8x128xf32>
    %157 = math.tanh %156 : vector<8x128xf32>
    %158 = vector.broadcast %25 : f32 to vector<8x128xf32>
    %159 = arith.mulf %92, %158 : vector<8x128xf32>
    %160 = vector.broadcast %29 : f32 to vector<8x128xf32>
    %161 = arith.mulf %109, %160 : vector<8x128xf32>
    %162 = arith.addf %159, %161 : vector<8x128xf32>
    %163 = vector.broadcast %33 : f32 to vector<8x128xf32>
    %164 = arith.mulf %126, %163 : vector<8x128xf32>
    %165 = arith.addf %162, %164 : vector<8x128xf32>
    %166 = vector.broadcast %37 : f32 to vector<8x128xf32>
    %167 = arith.mulf %143, %166 : vector<8x128xf32>
    %168 = arith.addf %165, %167 : vector<8x128xf32>
    %169 = vector.broadcast %41 : f32 to vector<8x128xf32>
    %170 = arith.addf %168, %169 : vector<8x128xf32>
    %171 = math.tanh %170 : vector<8x128xf32>
    %172 = vector.broadcast %26 : f32 to vector<8x128xf32>
    %173 = arith.mulf %92, %172 : vector<8x128xf32>
    %174 = vector.broadcast %30 : f32 to vector<8x128xf32>
    %175 = arith.mulf %109, %174 : vector<8x128xf32>
    %176 = arith.addf %173, %175 : vector<8x128xf32>
    %177 = vector.broadcast %34 : f32 to vector<8x128xf32>
    %178 = arith.mulf %126, %177 : vector<8x128xf32>
    %179 = arith.addf %176, %178 : vector<8x128xf32>
    %180 = vector.broadcast %38 : f32 to vector<8x128xf32>
    %181 = arith.mulf %143, %180 : vector<8x128xf32>
    %182 = arith.addf %179, %181 : vector<8x128xf32>
    %183 = vector.broadcast %42 : f32 to vector<8x128xf32>
    %184 = arith.addf %182, %183 : vector<8x128xf32>
    %185 = math.tanh %184 : vector<8x128xf32>
    %186 = vector.broadcast %27 : f32 to vector<8x128xf32>
    %187 = arith.mulf %92, %186 : vector<8x128xf32>
    %188 = vector.broadcast %31 : f32 to vector<8x128xf32>
    %189 = arith.mulf %109, %188 : vector<8x128xf32>
    %190 = arith.addf %187, %189 : vector<8x128xf32>
    %191 = vector.broadcast %35 : f32 to vector<8x128xf32>
    %192 = arith.mulf %126, %191 : vector<8x128xf32>
    %193 = arith.addf %190, %192 : vector<8x128xf32>
    %194 = vector.broadcast %39 : f32 to vector<8x128xf32>
    %195 = arith.mulf %143, %194 : vector<8x128xf32>
    %196 = arith.addf %193, %195 : vector<8x128xf32>
    %197 = vector.broadcast %43 : f32 to vector<8x128xf32>
    %198 = arith.addf %196, %197 : vector<8x128xf32>
    %199 = math.tanh %198 : vector<8x128xf32>
    %200 = vector.broadcast %44 : f32 to vector<8x128xf32>
    %201 = arith.mulf %157, %200 : vector<8x128xf32>
    %202 = vector.broadcast %47 : f32 to vector<8x128xf32>
    %203 = arith.mulf %171, %202 : vector<8x128xf32>
    %204 = arith.addf %201, %203 : vector<8x128xf32>
    %205 = vector.broadcast %50 : f32 to vector<8x128xf32>
    %206 = arith.mulf %185, %205 : vector<8x128xf32>
    %207 = arith.addf %204, %206 : vector<8x128xf32>
    %208 = vector.broadcast %53 : f32 to vector<8x128xf32>
    %209 = arith.mulf %199, %208 : vector<8x128xf32>
    %210 = arith.addf %207, %209 : vector<8x128xf32>
    %211 = vector.broadcast %56 : f32 to vector<8x128xf32>
    %212 = arith.addf %210, %211 : vector<8x128xf32>
    %c0_112 = arith.constant 0 : index
    %213 = arith.index_cast %60 : i32 to index
    %c0_113 = arith.constant 0 : index
    %214 = vector.load %arg8[%c0_112, %213, %c0_113] : memref<3x16x128xf32, #tpu.memory_space<vmem>>, vector<1x8x128xf32>
    %215 = vector.shape_cast %214 : vector<1x8x128xf32> to vector<8x128xf32>
    %216 = vector.shape_cast %212 : vector<8x128xf32> to vector<1x8x128xf32>
    tpu.vector_store %arg8[%c0_112, %213, %c0_113], %216 {strides = array<i32>} : memref<3x16x128xf32, #tpu.memory_space<vmem>>, vector<1x8x128xf32>,
    %217 = vector.broadcast %45 : f32 to vector<8x128xf32>
    %218 = arith.mulf %157, %217 : vector<8x128xf32>
    %219 = vector.broadcast %48 : f32 to vector<8x128xf32>
    %220 = arith.mulf %171, %219 : vector<8x128xf32>
    %221 = arith.addf %218, %220 : vector<8x128xf32>
    %222 = vector.broadcast %51 : f32 to vector<8x128xf32>
    %223 = arith.mulf %185, %222 : vector<8x128xf32>
    %224 = arith.addf %221, %223 : vector<8x128xf32>
    %225 = vector.broadcast %54 : f32 to vector<8x128xf32>
    %226 = arith.mulf %199, %225 : vector<8x128xf32>
    %227 = arith.addf %224, %226 : vector<8x128xf32>
    %228 = vector.broadcast %57 : f32 to vector<8x128xf32>
    %229 = arith.addf %227, %228 : vector<8x128xf32>
    %c1_114 = arith.constant 1 : index
    %230 = arith.index_cast %60 : i32 to index
    %c0_115 = arith.constant 0 : index
    %231 = vector.load %arg8[%c1_114, %230, %c0_115] : memref<3x16x128xf32, #tpu.memory_space<vmem>>, vector<1x8x128xf32>
    %232 = vector.shape_cast %231 : vector<1x8x128xf32> to vector<8x128xf32>
    %233 = vector.shape_cast %229 : vector<8x128xf32> to vector<1x8x128xf32>
    tpu.vector_store %arg8[%c1_114, %230, %c0_115], %233 {strides = array<i32>} : memref<3x16x128xf32, #tpu.memory_space<vmem>>, vector<1x8x128xf32>,
    %234 = vector.broadcast %46 : f32 to vector<8x128xf32>
    %235 = arith.mulf %157, %234 : vector<8x128xf32>
    %236 = vector.broadcast %49 : f32 to vector<8x128xf32>
    %237 = arith.mulf %171, %236 : vector<8x128xf32>
    %238 = arith.addf %235, %237 : vector<8x128xf32>
    %239 = vector.broadcast %52 : f32 to vector<8x128xf32>
    %240 = arith.mulf %185, %239 : vector<8x128xf32>
    %241 = arith.addf %238, %240 : vector<8x128xf32>
    %242 = vector.broadcast %55 : f32 to vector<8x128xf32>
    %243 = arith.mulf %199, %242 : vector<8x128xf32>
    %244 = arith.addf %241, %243 : vector<8x128xf32>
    %245 = vector.broadcast %58 : f32 to vector<8x128xf32>
    %246 = arith.addf %244, %245 : vector<8x128xf32>
    %c2_116 = arith.constant 2 : index
    %247 = arith.index_cast %60 : i32 to index
    %c0_117 = arith.constant 0 : index
    %248 = vector.load %arg8[%c2_116, %247, %c0_117] : memref<3x16x128xf32, #tpu.memory_space<vmem>>, vector<1x8x128xf32>
    %249 = vector.shape_cast %248 : vector<1x8x128xf32> to vector<8x128xf32>
    %250 = vector.shape_cast %246 : vector<8x128xf32> to vector<1x8x128xf32>
    tpu.vector_store %arg8[%c2_116, %247, %c0_117], %250 {strides = array<i32>} : memref<3x16x128xf32, #tpu.memory_space<vmem>>, vector<1x8x128xf32>,
    %c1_i32 = arith.constant 1 : i32
    %c8_i32_118 = arith.constant 8 : i32
    %251 = arith.muli %c1_i32, %c8_i32_118 : i32
    %252 = tpu.assume_multiple %251, 8 : i32
    %c0_119 = arith.constant 0 : index
    %253 = arith.index_cast %252 : i32 to index
    %c0_120 = arith.constant 0 : index
    %254 = vector.load %arg1[%c0_119, %253, %c0_120] : memref<5x16x128xf32, #tpu.memory_space<vmem>>, vector<1x8x128xf32>
    %255 = vector.shape_cast %254 : vector<1x8x128xf32> to vector<8x128xf32>
    %c1_121 = arith.constant 1 : index
    %256 = arith.index_cast %252 : i32 to index
    %c0_122 = arith.constant 0 : index
    %257 = vector.load %arg1[%c1_121, %256, %c0_122] : memref<5x16x128xf32, #tpu.memory_space<vmem>>, vector<1x8x128xf32>
    %258 = vector.shape_cast %257 : vector<1x8x128xf32> to vector<8x128xf32>
    %c2_123 = arith.constant 2 : index
    %259 = arith.index_cast %252 : i32 to index
    %c0_124 = arith.constant 0 : index
    %260 = vector.load %arg1[%c2_123, %259, %c0_124] : memref<5x16x128xf32, #tpu.memory_space<vmem>>, vector<1x8x128xf32>
    %261 = vector.shape_cast %260 : vector<1x8x128xf32> to vector<8x128xf32>
    %c3_125 = arith.constant 3 : index
    %262 = arith.index_cast %252 : i32 to index
    %c0_126 = arith.constant 0 : index
    %263 = vector.load %arg1[%c3_125, %262, %c0_126] : memref<5x16x128xf32, #tpu.memory_space<vmem>>, vector<1x8x128xf32>
    %264 = vector.shape_cast %263 : vector<1x8x128xf32> to vector<8x128xf32>
    %c4_127 = arith.constant 4 : index
    %265 = arith.index_cast %252 : i32 to index
    %c0_128 = arith.constant 0 : index
    %266 = vector.load %arg1[%c4_127, %265, %c0_128] : memref<5x16x128xf32, #tpu.memory_space<vmem>>, vector<1x8x128xf32>
    %267 = vector.shape_cast %266 : vector<1x8x128xf32> to vector<8x128xf32>
    %268 = vector.broadcast %0 : f32 to vector<8x128xf32>
    %269 = arith.mulf %255, %268 : vector<8x128xf32>
    %270 = vector.broadcast %4 : f32 to vector<8x128xf32>
    %271 = arith.mulf %258, %270 : vector<8x128xf32>
    %272 = arith.addf %269, %271 : vector<8x128xf32>
    %273 = vector.broadcast %8 : f32 to vector<8x128xf32>
    %274 = arith.mulf %261, %273 : vector<8x128xf32>
    %275 = arith.addf %272, %274 : vector<8x128xf32>
    %276 = vector.broadcast %12 : f32 to vector<8x128xf32>
    %277 = arith.mulf %264, %276 : vector<8x128xf32>
    %278 = arith.addf %275, %277 : vector<8x128xf32>
    %279 = vector.broadcast %16 : f32 to vector<8x128xf32>
    %280 = arith.mulf %267, %279 : vector<8x128xf32>
    %281 = arith.addf %278, %280 : vector<8x128xf32>
    %282 = vector.broadcast %20 : f32 to vector<8x128xf32>
    %283 = arith.addf %281, %282 : vector<8x128xf32>
    %284 = math.tanh %283 : vector<8x128xf32>
    %285 = vector.broadcast %1 : f32 to vector<8x128xf32>
    %286 = arith.mulf %255, %285 : vector<8x128xf32>
    %287 = vector.broadcast %5 : f32 to vector<8x128xf32>
    %288 = arith.mulf %258, %287 : vector<8x128xf32>
    %289 = arith.addf %286, %288 : vector<8x128xf32>
    %290 = vector.broadcast %9 : f32 to vector<8x128xf32>
    %291 = arith.mulf %261, %290 : vector<8x128xf32>
    %292 = arith.addf %289, %291 : vector<8x128xf32>
    %293 = vector.broadcast %13 : f32 to vector<8x128xf32>
    %294 = arith.mulf %264, %293 : vector<8x128xf32>
    %295 = arith.addf %292, %294 : vector<8x128xf32>
    %296 = vector.broadcast %17 : f32 to vector<8x128xf32>
    %297 = arith.mulf %267, %296 : vector<8x128xf32>
    %298 = arith.addf %295, %297 : vector<8x128xf32>
    %299 = vector.broadcast %21 : f32 to vector<8x128xf32>
    %300 = arith.addf %298, %299 : vector<8x128xf32>
    %301 = math.tanh %300 : vector<8x128xf32>
    %302 = vector.broadcast %2 : f32 to vector<8x128xf32>
    %303 = arith.mulf %255, %302 : vector<8x128xf32>
    %304 = vector.broadcast %6 : f32 to vector<8x128xf32>
    %305 = arith.mulf %258, %304 : vector<8x128xf32>
    %306 = arith.addf %303, %305 : vector<8x128xf32>
    %307 = vector.broadcast %10 : f32 to vector<8x128xf32>
    %308 = arith.mulf %261, %307 : vector<8x128xf32>
    %309 = arith.addf %306, %308 : vector<8x128xf32>
    %310 = vector.broadcast %14 : f32 to vector<8x128xf32>
    %311 = arith.mulf %264, %310 : vector<8x128xf32>
    %312 = arith.addf %309, %311 : vector<8x128xf32>
    %313 = vector.broadcast %18 : f32 to vector<8x128xf32>
    %314 = arith.mulf %267, %313 : vector<8x128xf32>
    %315 = arith.addf %312, %314 : vector<8x128xf32>
    %316 = vector.broadcast %22 : f32 to vector<8x128xf32>
    %317 = arith.addf %315, %316 : vector<8x128xf32>
    %318 = math.tanh %317 : vector<8x128xf32>
    %319 = vector.broadcast %3 : f32 to vector<8x128xf32>
    %320 = arith.mulf %255, %319 : vector<8x128xf32>
    %321 = vector.broadcast %7 : f32 to vector<8x128xf32>
    %322 = arith.mulf %258, %321 : vector<8x128xf32>
    %323 = arith.addf %320, %322 : vector<8x128xf32>
    %324 = vector.broadcast %11 : f32 to vector<8x128xf32>
    %325 = arith.mulf %261, %324 : vector<8x128xf32>
    %326 = arith.addf %323, %325 : vector<8x128xf32>
    %327 = vector.broadcast %15 : f32 to vector<8x128xf32>
    %328 = arith.mulf %264, %327 : vector<8x128xf32>
    %329 = arith.addf %326, %328 : vector<8x128xf32>
    %330 = vector.broadcast %19 : f32 to vector<8x128xf32>
    %331 = arith.mulf %267, %330 : vector<8x128xf32>
    %332 = arith.addf %329, %331 : vector<8x128xf32>
    %333 = vector.broadcast %23 : f32 to vector<8x128xf32>
    %334 = arith.addf %332, %333 : vector<8x128xf32>
    %335 = math.tanh %334 : vector<8x128xf32>
    %336 = vector.broadcast %24 : f32 to vector<8x128xf32>
    %337 = arith.mulf %284, %336 : vector<8x128xf32>
    %338 = vector.broadcast %28 : f32 to vector<8x128xf32>
    %339 = arith.mulf %301, %338 : vector<8x128xf32>
    %340 = arith.addf %337, %339 : vector<8x128xf32>
    %341 = vector.broadcast %32 : f32 to vector<8x128xf32>
    %342 = arith.mulf %318, %341 : vector<8x128xf32>
    %343 = arith.addf %340, %342 : vector<8x128xf32>
    %344 = vector.broadcast %36 : f32 to vector<8x128xf32>
    %345 = arith.mulf %335, %344 : vector<8x128xf32>
    %346 = arith.addf %343, %345 : vector<8x128xf32>
    %347 = vector.broadcast %40 : f32 to vector<8x128xf32>
    %348 = arith.addf %346, %347 : vector<8x128xf32>
    %349 = math.tanh %348 : vector<8x128xf32>
    %350 = vector.broadcast %25 : f32 to vector<8x128xf32>
    %351 = arith.mulf %284, %350 : vector<8x128xf32>
    %352 = vector.broadcast %29 : f32 to vector<8x128xf32>
    %353 = arith.mulf %301, %352 : vector<8x128xf32>
    %354 = arith.addf %351, %353 : vector<8x128xf32>
    %355 = vector.broadcast %33 : f32 to vector<8x128xf32>
    %356 = arith.mulf %318, %355 : vector<8x128xf32>
    %357 = arith.addf %354, %356 : vector<8x128xf32>
    %358 = vector.broadcast %37 : f32 to vector<8x128xf32>
    %359 = arith.mulf %335, %358 : vector<8x128xf32>
    %360 = arith.addf %357, %359 : vector<8x128xf32>
    %361 = vector.broadcast %41 : f32 to vector<8x128xf32>
    %362 = arith.addf %360, %361 : vector<8x128xf32>
    %363 = math.tanh %362 : vector<8x128xf32>
    %364 = vector.broadcast %26 : f32 to vector<8x128xf32>
    %365 = arith.mulf %284, %364 : vector<8x128xf32>
    %366 = vector.broadcast %30 : f32 to vector<8x128xf32>
    %367 = arith.mulf %301, %366 : vector<8x128xf32>
    %368 = arith.addf %365, %367 : vector<8x128xf32>
    %369 = vector.broadcast %34 : f32 to vector<8x128xf32>
    %370 = arith.mulf %318, %369 : vector<8x128xf32>
    %371 = arith.addf %368, %370 : vector<8x128xf32>
    %372 = vector.broadcast %38 : f32 to vector<8x128xf32>
    %373 = arith.mulf %335, %372 : vector<8x128xf32>
    %374 = arith.addf %371, %373 : vector<8x128xf32>
    %375 = vector.broadcast %42 : f32 to vector<8x128xf32>
    %376 = arith.addf %374, %375 : vector<8x128xf32>
    %377 = math.tanh %376 : vector<8x128xf32>
    %378 = vector.broadcast %27 : f32 to vector<8x128xf32>
    %379 = arith.mulf %284, %378 : vector<8x128xf32>
    %380 = vector.broadcast %31 : f32 to vector<8x128xf32>
    %381 = arith.mulf %301, %380 : vector<8x128xf32>
    %382 = arith.addf %379, %381 : vector<8x128xf32>
    %383 = vector.broadcast %35 : f32 to vector<8x128xf32>
    %384 = arith.mulf %318, %383 : vector<8x128xf32>
    %385 = arith.addf %382, %384 : vector<8x128xf32>
    %386 = vector.broadcast %39 : f32 to vector<8x128xf32>
    %387 = arith.mulf %335, %386 : vector<8x128xf32>
    %388 = arith.addf %385, %387 : vector<8x128xf32>
    %389 = vector.broadcast %43 : f32 to vector<8x128xf32>
    %390 = arith.addf %388, %389 : vector<8x128xf32>
    %391 = math.tanh %390 : vector<8x128xf32>
    %392 = vector.broadcast %44 : f32 to vector<8x128xf32>
    %393 = arith.mulf %349, %392 : vector<8x128xf32>
    %394 = vector.broadcast %47 : f32 to vector<8x128xf32>
    %395 = arith.mulf %363, %394 : vector<8x128xf32>
    %396 = arith.addf %393, %395 : vector<8x128xf32>
    %397 = vector.broadcast %50 : f32 to vector<8x128xf32>
    %398 = arith.mulf %377, %397 : vector<8x128xf32>
    %399 = arith.addf %396, %398 : vector<8x128xf32>
    %400 = vector.broadcast %53 : f32 to vector<8x128xf32>
    %401 = arith.mulf %391, %400 : vector<8x128xf32>
    %402 = arith.addf %399, %401 : vector<8x128xf32>
    %403 = vector.broadcast %56 : f32 to vector<8x128xf32>
    %404 = arith.addf %402, %403 : vector<8x128xf32>
    %c0_129 = arith.constant 0 : index
    %405 = arith.index_cast %252 : i32 to index
    %c0_130 = arith.constant 0 : index
    %406 = vector.load %arg8[%c0_129, %405, %c0_130] : memref<3x16x128xf32, #tpu.memory_space<vmem>>, vector<1x8x128xf32>
    %407 = vector.shape_cast %406 : vector<1x8x128xf32> to vector<8x128xf32>
    %408 = vector.shape_cast %404 : vector<8x128xf32> to vector<1x8x128xf32>
    tpu.vector_store %arg8[%c0_129, %405, %c0_130], %408 {strides = array<i32>} : memref<3x16x128xf32, #tpu.memory_space<vmem>>, vector<1x8x128xf32>,
    %409 = vector.broadcast %45 : f32 to vector<8x128xf32>
    %410 = arith.mulf %349, %409 : vector<8x128xf32>
    %411 = vector.broadcast %48 : f32 to vector<8x128xf32>
    %412 = arith.mulf %363, %411 : vector<8x128xf32>
    %413 = arith.addf %410, %412 : vector<8x128xf32>
    %414 = vector.broadcast %51 : f32 to vector<8x128xf32>
    %415 = arith.mulf %377, %414 : vector<8x128xf32>
    %416 = arith.addf %413, %415 : vector<8x128xf32>
    %417 = vector.broadcast %54 : f32 to vector<8x128xf32>
    %418 = arith.mulf %391, %417 : vector<8x128xf32>
    %419 = arith.addf %416, %418 : vector<8x128xf32>
    %420 = vector.broadcast %57 : f32 to vector<8x128xf32>
    %421 = arith.addf %419, %420 : vector<8x128xf32>
    %c1_131 = arith.constant 1 : index
    %422 = arith.index_cast %252 : i32 to index
    %c0_132 = arith.constant 0 : index
    %423 = vector.load %arg8[%c1_131, %422, %c0_132] : memref<3x16x128xf32, #tpu.memory_space<vmem>>, vector<1x8x128xf32>
    %424 = vector.shape_cast %423 : vector<1x8x128xf32> to vector<8x128xf32>
    %425 = vector.shape_cast %421 : vector<8x128xf32> to vector<1x8x128xf32>
    tpu.vector_store %arg8[%c1_131, %422, %c0_132], %425 {strides = array<i32>} : memref<3x16x128xf32, #tpu.memory_space<vmem>>, vector<1x8x128xf32>,
    %426 = vector.broadcast %46 : f32 to vector<8x128xf32>
    %427 = arith.mulf %349, %426 : vector<8x128xf32>
    %428 = vector.broadcast %49 : f32 to vector<8x128xf32>
    %429 = arith.mulf %363, %428 : vector<8x128xf32>
    %430 = arith.addf %427, %429 : vector<8x128xf32>
    %431 = vector.broadcast %52 : f32 to vector<8x128xf32>
    %432 = arith.mulf %377, %431 : vector<8x128xf32>
    %433 = arith.addf %430, %432 : vector<8x128xf32>
    %434 = vector.broadcast %55 : f32 to vector<8x128xf32>
    %435 = arith.mulf %391, %434 : vector<8x128xf32>
    %436 = arith.addf %433, %435 : vector<8x128xf32>
    %437 = vector.broadcast %58 : f32 to vector<8x128xf32>
    %438 = arith.addf %436, %437 : vector<8x128xf32>
    %c2_133 = arith.constant 2 : index
    %439 = arith.index_cast %252 : i32 to index
    %c0_134 = arith.constant 0 : index
    %440 = vector.load %arg8[%c2_133, %439, %c0_134] : memref<3x16x128xf32, #tpu.memory_space<vmem>>, vector<1x8x128xf32>
    %441 = vector.shape_cast %440 : vector<1x8x128xf32> to vector<8x128xf32>
    %442 = vector.shape_cast %438 : vector<8x128xf32> to vector<1x8x128xf32>
    tpu.vector_store %arg8[%c2_133, %439, %c0_134], %442 {strides = array<i32>} : memref<3x16x128xf32, #tpu.memory_space<vmem>>, vector<1x8x128xf32>,
    %c2_i32 = arith.constant 2 : i32
    return
  }
  func.func @transform_0(%arg0: i32) -> (i32, i32, i32) {
    %c0_i32 = arith.constant 0 : i32
    %c0_i32_0 = arith.constant 0 : i32
    %c0_i32_1 = arith.constant 0 : i32
    return %c0_i32, %arg0, %c0_i32_0 : i32, i32, i32
  }
  func.func @transform_1(%arg0: i32) -> (i32, i32) {
    %c0_i32 = arith.constant 0 : i32
    %c0_i32_0 = arith.constant 0 : i32
    %c0_i32_1 = arith.constant 0 : i32
    return %c0_i32, %c0_i32_0 : i32, i32
  }
  func.func @transform_2(%arg0: i32) -> i32 {
    %c0_i32 = arith.constant 0 : i32
    %c0_i32_0 = arith.constant 0 : i32
    return %c0_i32 : i32
  }
  func.func @transform_3(%arg0: i32) -> (i32, i32) {
    %c0_i32 = arith.constant 0 : i32
    %c0_i32_0 = arith.constant 0 : i32
    %c0_i32_1 = arith.constant 0 : i32
    return %c0_i32, %c0_i32_0 : i32, i32
  }
  func.func @transform_4(%arg0: i32) -> i32 {
    %c0_i32 = arith.constant 0 : i32
    %c0_i32_0 = arith.constant 0 : i32
    return %c0_i32 : i32
  }
  func.func @transform_5(%arg0: i32) -> (i32, i32) {
    %c0_i32 = arith.constant 0 : i32
    %c0_i32_0 = arith.constant 0 : i32
    %c0_i32_1 = arith.constant 0 : i32
    return %c0_i32, %c0_i32_0 : i32, i32
  }
  func.func @transform_6(%arg0: i32) -> i32 {
    %c0_i32 = arith.constant 0 : i32
    %c0_i32_0 = arith.constant 0 : i32
    return %c0_i32 : i32
  }
  func.func @transform_7(%arg0: i32) -> (i32, i32, i32) {
    %c0_i32 = arith.constant 0 : i32
    %c0_i32_0 = arith.constant 0 : i32
    %c0_i32_1 = arith.constant 0 : i32
    return %c0_i32, %arg0, %c0_i32_0 : i32, i32, i32
  }
}

</mosaic_0001>

<llo_original>
// kernel: tpu_custom_call.1
$region0: #{tpu_custom_call.1}
  #allocation0 [shape = 'u32[]', space=smem, size = 0x4, offset = 0x4, fixed_abs, tag = 'smem constant byte address 0x4 - core index']
  #allocation1 [shape = 'u32[144,128]{1,0:T(1,128)}', space=vmem, size = 0x12000, scoped, tag = 'internal scratch']
  %s0 = inlined_call_operand.hbm [shape: f32[5,16,128], index: 0, kind: input, shape index: {}]
  %s1 = inlined_call_operand.vmem [shape: f32[5,4], index: 1, kind: input, shape index: {}]
  %s2 = inlined_call_operand.vmem [shape: f32[4], index: 2, kind: input, shape index: {}]
  %s3 = inlined_call_operand.vmem [shape: f32[4,4], index: 3, kind: input, shape index: {}]
  %s4 = inlined_call_operand.vmem [shape: f32[4], index: 4, kind: input, shape index: {}]
  %s5 = inlined_call_operand.vmem [shape: f32[4,3], index: 5, kind: input, shape index: {}]
  %s6 = inlined_call_operand.vmem [shape: f32[3], index: 6, kind: input, shape index: {}]
  %s7 = inlined_call_operand.hbm [shape: f32[3,16,128], index: 7, kind: output, shape index: {}]
  %s8 = sld [smem:[#allocation0]]
  $region66: #{tpu_custom_call.1} parent=0
    _
  %s10 = ssub.s32 1, %s8
  %s11 = scalar_select 0, %s10, %s8
  $region1: #{tpu_custom_call.1} parent=0
    #allocation2 [shape = 'u8[40960]{0}', space=vmem, size = 0xa000, scoped, tag = 'input window, operand 0, single buffered']
    #allocation3 [shape = 's32[1]{0}', space=sflag, size = 0x4, scoped, tag = 'scoped memory for tpu_custom_call.1']
    #allocation4 [shape = 's32[1]{0}', space=sflag, size = 0x4, scoped, tag = 'scoped memory for tpu_custom_call.1']
    #allocation5 [shape = 's32[1]{0}', space=sflag, size = 0x4, scoped, tag = 'scoped memory for tpu_custom_call.1']
    #allocation6 [shape = 'u8[4096]{0}', space=smem, size = 0x1000, scoped, tag = 'input window, operand 1, single buffered']
    #allocation7 [shape = 'u8[512]{0}', space=smem, size = 0x200, scoped, tag = 'input window, operand 2, single buffered']
    #allocation8 [shape = 's32[1]{0}', space=sflag, size = 0x4, scoped, tag = 'scoped memory for tpu_custom_call.1']
    #allocation9 [shape = 'u8[2048]{0}', space=smem, size = 0x800, scoped, tag = 'input window, operand 3, single buffered']
    #allocation10 [shape = 'u8[512]{0}', space=smem, size = 0x200, scoped, tag = 'input window, operand 4, single buffered']
    #allocation11 [shape = 's32[1]{0}', space=sflag, size = 0x4, scoped, tag = 'scoped memory for tpu_custom_call.1']
    #allocation12 [shape = 'u8[2048]{0}', space=smem, size = 0x800, scoped, tag = 'input window, operand 5, single buffered']
    #allocation13 [shape = 'u8[512]{0}', space=smem, size = 0x200, scoped, tag = 'input window, operand 6, single buffered']
    #allocation14 [shape = 's32[1]{0}', space=sflag, size = 0x4, scoped, tag = 'scoped memory for tpu_custom_call.1']
    #allocation15 [shape = 'u8[24576]{0}', space=vmem, size = 0x6000, scoped, tag = 'output window, operand 0, single buffered']
    %12 = vsyncpa [#allocation3], 0
    %13 = vsyncpa [#allocation5], 0
    %14 = vsyncpa [#allocation8], 0
    %15 = vsyncpa [#allocation11], 0
    %16 = vsyncpa [#allocation14], 0
    %17 = vsyncpa [#allocation4], 0
    // Predicated region
    $region2: #{tpu_custom_call.1} parent=1 // pred_check
      _
    $region3: #{tpu_custom_call.1} parent=1 // pred_check_branch
      %19 = sbr.rel (0) target = $region5
    $region4: #{tpu_custom_call.1} parent=1 // pred_region
      %s21 = ssub.s32 1280, 1280
      %22 = vsyncadd [#allocation3], %s21
      %s23 = sshll.u32 [#allocation2], 4
      %s24 = int_to_ptr.vmem [resolvable:$true] %s23
      %29 = dma.hbm_to_vmem [thread:$0]  %s0, 1280, %s24, [#allocation3], 128, 128, 8
    $region5: #{tpu_custom_call.1} parent=1 // pred_fallthru
      _
    // Predicated region
    $region6: #{tpu_custom_call.1} parent=1 // pred_check
      _
    $region7: #{tpu_custom_call.1} parent=1 // pred_check_branch
      %31 = sbr.rel (0) target = $region9
    $region8: #{tpu_custom_call.1} parent=1 // pred_region
      %s33 = ssub.s32 128, 128
      %34 = vsyncadd [#allocation5], %s33
      %s36 = sshll.u32 %s1, 4
      %s37 = int_to_ptr.vmem [resolvable:$true] %s36
      %39 = dma.vmem_to_smem %s37, 128, [#allocation6], [#allocation5]
    $region9: #{tpu_custom_call.1} parent=1 // pred_fallthru
      _
    // Predicated region
    $region10: #{tpu_custom_call.1} parent=1 // pred_check
      _
    $region11: #{tpu_custom_call.1} parent=1 // pred_check_branch
      %41 = sbr.rel (0) target = $region13
    $region12: #{tpu_custom_call.1} parent=1 // pred_region
      %s43 = ssub.s32 16, 16
      %44 = vsyncadd [#allocation8], %s43
      %s46 = sshll.u32 %s2, 4
      %s47 = int_to_ptr.vmem [resolvable:$true] %s46
      %49 = dma.vmem_to_smem %s47, 16, [#allocation7], [#allocation8]
    $region13: #{tpu_custom_call.1} parent=1 // pred_fallthru
      _
    // Predicated region
    $region14: #{tpu_custom_call.1} parent=1 // pred_check
      _
    $region15: #{tpu_custom_call.1} parent=1 // pred_check_branch
      %51 = sbr.rel (0) target = $region17
    $region16: #{tpu_custom_call.1} parent=1 // pred_region
      %s53 = ssub.s32 64, 64
      %54 = vsyncadd [#allocation8], %s53
      %s56 = sshll.u32 %s3, 4
      %s57 = int_to_ptr.vmem [resolvable:$true] %s56
      %59 = dma.vmem_to_smem %s57, 64, [#allocation9], [#allocation8]
    $region17: #{tpu_custom_call.1} parent=1 // pred_fallthru
      _
    // Predicated region
    $region18: #{tpu_custom_call.1} parent=1 // pred_check
      _
    $region19: #{tpu_custom_call.1} parent=1 // pred_check_branch
      %61 = sbr.rel (0) target = $region21
    $region20: #{tpu_custom_call.1} parent=1 // pred_region
      %s63 = ssub.s32 16, 16
      %64 = vsyncadd [#allocation11], %s63
      %s66 = sshll.u32 %s4, 4
      %s67 = int_to_ptr.vmem [resolvable:$true] %s66
      %69 = dma.vmem_to_smem %s67, 16, [#allocation10], [#allocation11]
    $region21: #{tpu_custom_call.1} parent=1 // pred_fallthru
      _
    // Predicated region
    $region22: #{tpu_custom_call.1} parent=1 // pred_check
      _
    $region23: #{tpu_custom_call.1} parent=1 // pred_check_branch
      %71 = sbr.rel (0) target = $region25
    $region24: #{tpu_custom_call.1} parent=1 // pred_region
      %s73 = ssub.s32 64, 64
      %74 = vsyncadd [#allocation11], %s73
      %s76 = sshll.u32 %s5, 4
      %s77 = int_to_ptr.vmem [resolvable:$true] %s76
      %79 = dma.vmem_to_smem %s77, 64, [#allocation12], [#allocation11]
    $region25: #{tpu_custom_call.1} parent=1 // pred_fallthru
      _
    // Predicated region
    $region26: #{tpu_custom_call.1} parent=1 // pred_check
      _
    $region27: #{tpu_custom_call.1} parent=1 // pred_check_branch
      %81 = sbr.rel (0) target = $region29
    $region28: #{tpu_custom_call.1} parent=1 // pred_region
      %s83 = ssub.s32 16, 16
      %84 = vsyncadd [#allocation14], %s83
      %s86 = sshll.u32 %s6, 4
      %s87 = int_to_ptr.vmem [resolvable:$true] %s86
      %89 = dma.vmem_to_smem %s87, 16, [#allocation13], [#allocation14]
    $region29: #{tpu_custom_call.1} parent=1 // pred_fallthru
      _
    // Predicated region
    $region30: #{tpu_custom_call.1} parent=1 // pred_check
      _
    $region31: #{tpu_custom_call.1} parent=1 // pred_check_branch
      %91 = sbr.rel (0) target = $region33
    $region32: #{tpu_custom_call.1} parent=1 // pred_region
      %92 = dma.done [#allocation3], 1280
    $region33: #{tpu_custom_call.1} parent=1 // pred_fallthru
      _
    // Predicated region
    $region34: #{tpu_custom_call.1} parent=1 // pred_check
      _
    $region35: #{tpu_custom_call.1} parent=1 // pred_check_branch
      %94 = sbr.rel (0) target = $region37
    $region36: #{tpu_custom_call.1} parent=1 // pred_region
      %95 = dma.done [#allocation5], 128
    $region37: #{tpu_custom_call.1} parent=1 // pred_fallthru
      _
    // Predicated region
    $region38: #{tpu_custom_call.1} parent=1 // pred_check
      _
    $region39: #{tpu_custom_call.1} parent=1 // pred_check_branch
      %97 = sbr.rel (0) target = $region41
    $region40: #{tpu_custom_call.1} parent=1 // pred_region
      %98 = dma.done [#allocation8], 16
    $region41: #{tpu_custom_call.1} parent=1 // pred_fallthru
      _
    // Predicated region
    $region42: #{tpu_custom_call.1} parent=1 // pred_check
      _
    $region43: #{tpu_custom_call.1} parent=1 // pred_check_branch
      %100 = sbr.rel (0) target = $region45
    $region44: #{tpu_custom_call.1} parent=1 // pred_region
      %101 = dma.done [#allocation8], 64
    $region45: #{tpu_custom_call.1} parent=1 // pred_fallthru
      _
    // Predicated region
    $region46: #{tpu_custom_call.1} parent=1 // pred_check
      _
    $region47: #{tpu_custom_call.1} parent=1 // pred_check_branch
      %103 = sbr.rel (0) target = $region49
    $region48: #{tpu_custom_call.1} parent=1 // pred_region
      %104 = dma.done [#allocation11], 16
    $region49: #{tpu_custom_call.1} parent=1 // pred_fallthru
      _
    // Predicated region
    $region50: #{tpu_custom_call.1} parent=1 // pred_check
      _
    $region51: #{tpu_custom_call.1} parent=1 // pred_check_branch
      %106 = sbr.rel (0) target = $region53
    $region52: #{tpu_custom_call.1} parent=1 // pred_region
      %107 = dma.done [#allocation11], 64
    $region53: #{tpu_custom_call.1} parent=1 // pred_fallthru
      _
    // Predicated region
    $region54: #{tpu_custom_call.1} parent=1 // pred_check
      _
    $region55: #{tpu_custom_call.1} parent=1 // pred_check_branch
      %109 = sbr.rel (0) target = $region57
    $region56: #{tpu_custom_call.1} parent=1 // pred_region
      %110 = dma.done [#allocation14], 16
    $region57: #{tpu_custom_call.1} parent=1 // pred_fallthru
      _
    %111 = sfence
    %s112 = sld [smem:[#allocation6]]
    %s113 = sld [smem:[#allocation6 + $0x1]]
    %s114 = sld [smem:[#allocation6 + $0x2]]
    %s115 = sld [smem:[#allocation6 + $0x3]]
    %s116 = sld [smem:[#allocation6 + $0x80]]
    %s117 = sld [smem:[#allocation6 + $0x81]]
    %s118 = sld [smem:[#allocation6 + $0x82]]
    %s119 = sld [smem:[#allocation6 + $0x83]]
    %s120 = sld [smem:[#allocation6 + $0x100]]
    %s121 = sld [smem:[#allocation6 + $0x101]]
    %s122 = sld [smem:[#allocation6 + $0x102]]
    %s123 = sld [smem:[#allocation6 + $0x103]]
    %s124 = sld [smem:[#allocation6 + $0x180]]
    %s125 = sld [smem:[#allocation6 + $0x181]]
    %s126 = sld [smem:[#allocation6 + $0x182]]
    %s127 = sld [smem:[#allocation6 + $0x183]]
    %s128 = sld [smem:[#allocation6 + $0x200]]
    %s129 = sld [smem:[#allocation6 + $0x201]]
    %s130 = sld [smem:[#allocation6 + $0x202]]
    %s131 = sld [smem:[#allocation6 + $0x203]]
    %s132 = sld [smem:[#allocation7]]
    %s133 = sld [smem:[#allocation7 + $0x1]]
    %s134 = sld [smem:[#allocation7 + $0x2]]
    %s135 = sld [smem:[#allocation7 + $0x3]]
    %s136 = sld [smem:[#allocation9]]
    %s137 = sld [smem:[#allocation9 + $0x1]]
    %s138 = sld [smem:[#allocation9 + $0x2]]
    %s139 = sld [smem:[#allocation9 + $0x3]]
    %s140 = sld [smem:[#allocation9 + $0x80]]
    %s141 = sld [smem:[#allocation9 + $0x81]]
    %s142 = sld [smem:[#allocation9 + $0x82]]
    %s143 = sld [smem:[#allocation9 + $0x83]]
    %s144 = sld [smem:[#allocation9 + $0x100]]
    %s145 = sld [smem:[#allocation9 + $0x101]]
    %s146 = sld [smem:[#allocation9 + $0x102]]
    %s147 = sld [smem:[#allocation9 + $0x103]]
    %s148 = sld [smem:[#allocation9 + $0x180]]
    %s149 = sld [smem:[#allocation9 + $0x181]]
    %s150 = sld [smem:[#allocation9 + $0x182]]
    %s151 = sld [smem:[#allocation9 + $0x183]]
    %s152 = sld [smem:[#allocation10]]
    %s153 = sld [smem:[#allocation10 + $0x1]]
    %s154 = sld [smem:[#allocation10 + $0x2]]
    %s155 = sld [smem:[#allocation10 + $0x3]]
    %s156 = sld [smem:[#allocation12]]
    %s157 = sld [smem:[#allocation12 + $0x1]]
    %s158 = sld [smem:[#allocation12 + $0x2]]
    %s159 = sld [smem:[#allocation12 + $0x80]]
    %s160 = sld [smem:[#allocation12 + $0x81]]
    %s161 = sld [smem:[#allocation12 + $0x82]]
    %s162 = sld [smem:[#allocation12 + $0x100]]
    %s163 = sld [smem:[#allocation12 + $0x101]]
    %s164 = sld [smem:[#allocation12 + $0x102]]
    %s165 = sld [smem:[#allocation12 + $0x180]]
    %s166 = sld [smem:[#allocation12 + $0x181]]
    %s167 = sld [smem:[#allocation12 + $0x182]]
    %s168 = sld [smem:[#allocation13]]
    %s169 = sld [smem:[#allocation13 + $0x1]]
    %s170 = sld [smem:[#allocation13 + $0x2]]
    %v171 = vld [vmem:[#allocation2] sm:$0xff]
    %s172 = sadd.s32 0, 16
    %s173 = scalar_lea.vmem [#allocation2], %s172
    %v174 = vld [vmem:[%s173] sm:$0xff]
    %s175 = sadd.s32 0, 32
    %s176 = scalar_lea.vmem [#allocation2], %s175
    %v177 = vld [vmem:[%s176] sm:$0xff]
    %s178 = sadd.s32 0, 48
    %s179 = scalar_lea.vmem [#allocation2], %s178
    %v180 = vld [vmem:[%s179] sm:$0xff]
    %s181 = sadd.s32 0, 64
    %s182 = scalar_lea.vmem [#allocation2], %s181
    %v183 = vld [vmem:[%s182] sm:$0xff]
    %v184 = vstv %s112
    %v185 = vmul.f32 %v171, %v184
    %v186 = vstv %s116
    %v187 = vmul.f32 %v174, %v186
    %v188 = vadd.f32 %v185, %v187
    %v189 = vstv %s120
    %v190 = vmul.f32 %v177, %v189
    %v191 = vadd.f32 %v188, %v190
    %v192 = vstv %s124
    %v193 = vmul.f32 %v180, %v192
    %v194 = vadd.f32 %v191, %v193
    %v195 = vstv %s128
    %v196 = vmul.f32 %v183, %v195
    %v197 = vadd.f32 %v194, %v196
    %v198 = vstv %s132
    %v199 = vadd.f32 %v197, %v198
    %v200 = vtanh.pop %v199
    %v201 = vstv %s113
    %v202 = vmul.f32 %v171, %v201
    %v203 = vstv %s117
    %v204 = vmul.f32 %v174, %v203
    %v205 = vadd.f32 %v202, %v204
    %v206 = vstv %s121
    %v207 = vmul.f32 %v177, %v206
    %v208 = vadd.f32 %v205, %v207
    %v209 = vstv %s125
    %v210 = vmul.f32 %v180, %v209
    %v211 = vadd.f32 %v208, %v210
    %v212 = vstv %s129
    %v213 = vmul.f32 %v183, %v212
    %v214 = vadd.f32 %v211, %v213
    %v215 = vstv %s133
    %v216 = vadd.f32 %v214, %v215
    %v217 = vtanh.pop %v216
    %v218 = vstv %s114
    %v219 = vmul.f32 %v171, %v218
    %v220 = vstv %s118
    %v221 = vmul.f32 %v174, %v220
    %v222 = vadd.f32 %v219, %v221
    %v223 = vstv %s122
    %v224 = vmul.f32 %v177, %v223
    %v225 = vadd.f32 %v222, %v224
    %v226 = vstv %s126
    %v227 = vmul.f32 %v180, %v226
    %v228 = vadd.f32 %v225, %v227
    %v229 = vstv %s130
    %v230 = vmul.f32 %v183, %v229
    %v231 = vadd.f32 %v228, %v230
    %v232 = vstv %s134
    %v233 = vadd.f32 %v231, %v232
    %v234 = vtanh.pop %v233
    %v235 = vstv %s115
    %v236 = vmul.f32 %v171, %v235
    %v237 = vstv %s119
    %v238 = vmul.f32 %v174, %v237
    %v239 = vadd.f32 %v236, %v238
    %v240 = vstv %s123
    %v241 = vmul.f32 %v177, %v240
    %v242 = vadd.f32 %v239, %v241
    %v243 = vstv %s127
    %v244 = vmul.f32 %v180, %v243
    %v245 = vadd.f32 %v242, %v244
    %v246 = vstv %s131
    %v247 = vmul.f32 %v183, %v246
    %v248 = vadd.f32 %v245, %v247
    %v249 = vstv %s135
    %v250 = vadd.f32 %v248, %v249
    %v251 = vtanh.pop %v250
    %v252 = vstv %s136
    %v253 = vmul.f32 %v200, %v252
    %v254 = vstv %s140
    %v255 = vmul.f32 %v217, %v254
    %v256 = vadd.f32 %v253, %v255
    %v257 = vstv %s144
    %v258 = vmul.f32 %v234, %v257
    %v259 = vadd.f32 %v256, %v258
    %v260 = vstv %s148
    %v261 = vmul.f32 %v251, %v260
    %v262 = vadd.f32 %v259, %v261
    %v263 = vstv %s152
    %v264 = vadd.f32 %v262, %v263
    %v265 = vtanh.pop %v264
    %v266 = vstv %s137
    %v267 = vmul.f32 %v200, %v266
    %v268 = vstv %s141
    %v269 = vmul.f32 %v217, %v268
    %v270 = vadd.f32 %v267, %v269
    %v271 = vstv %s145
    %v272 = vmul.f32 %v234, %v271
    %v273 = vadd.f32 %v270, %v272
    %v274 = vstv %s149
    %v275 = vmul.f32 %v251, %v274
    %v276 = vadd.f32 %v273, %v275
    %v277 = vstv %s153
    %v278 = vadd.f32 %v276, %v277
    %v279 = vtanh.pop %v278
    %v280 = vstv %s138
    %v281 = vmul.f32 %v200, %v280
    %v282 = vstv %s142
    %v283 = vmul.f32 %v217, %v282
    %v284 = vadd.f32 %v281, %v283
    %v285 = vstv %s146
    %v286 = vmul.f32 %v234, %v285
    %v287 = vadd.f32 %v284, %v286
    %v288 = vstv %s150
    %v289 = vmul.f32 %v251, %v288
    %v290 = vadd.f32 %v287, %v289
    %v291 = vstv %s154
    %v292 = vadd.f32 %v290, %v291
    %v293 = vtanh.pop %v292
    %v294 = vstv %s139
    %v295 = vmul.f32 %v200, %v294
    %v296 = vstv %s143
    %v297 = vmul.f32 %v217, %v296
    %v298 = vadd.f32 %v295, %v297
    %v299 = vstv %s147
    %v300 = vmul.f32 %v234, %v299
    %v301 = vadd.f32 %v298, %v300
    %v302 = vstv %s151
    %v303 = vmul.f32 %v251, %v302
    %v304 = vadd.f32 %v301, %v303
    %v305 = vstv %s155
    %v306 = vadd.f32 %v304, %v305
    %v307 = vtanh.pop %v306
    %v308 = vstv %s156
    %v309 = vmul.f32 %v265, %v308
    %v310 = vstv %s159
    %v311 = vmul.f32 %v279, %v310
    %v312 = vadd.f32 %v309, %v311
    %v313 = vstv %s162
    %v314 = vmul.f32 %v293, %v313
    %v315 = vadd.f32 %v312, %v314
    %v316 = vstv %s165
    %v317 = vmul.f32 %v307, %v316
    %v318 = vadd.f32 %v315, %v317
    %v319 = vstv %s168
    %v320 = vadd.f32 %v318, %v319
    %321 = vst [vmem:[#allocation15] sm:$0xff] %v320
    %v322 = vstv %s157
    %v323 = vmul.f32 %v265, %v322
    %v324 = vstv %s160
    %v325 = vmul.f32 %v279, %v324
    %v326 = vadd.f32 %v323, %v325
    %v327 = vstv %s163
    %v328 = vmul.f32 %v293, %v327
    %v329 = vadd.f32 %v326, %v328
    %v330 = vstv %s166
    %v331 = vmul.f32 %v307, %v330
    %v332 = vadd.f32 %v329, %v331
    %v333 = vstv %s169
    %v334 = vadd.f32 %v332, %v333
    %s335 = scalar_lea.vmem [#allocation15], %s172
    %336 = vst [vmem:[%s335] sm:$0xff] %v334
    %v337 = vstv %s158
    %v338 = vmul.f32 %v265, %v337
    %v339 = vstv %s161
    %v340 = vmul.f32 %v279, %v339
    %v341 = vadd.f32 %v338, %v340
    %v342 = vstv %s164
    %v343 = vmul.f32 %v293, %v342
    %v344 = vadd.f32 %v341, %v343
    %v345 = vstv %s167
    %v346 = vmul.f32 %v307, %v345
    %v347 = vadd.f32 %v344, %v346
    %v348 = vstv %s170
    %v349 = vadd.f32 %v347, %v348
    %s350 = scalar_lea.vmem [#allocation15], %s175
    %351 = vst [vmem:[%s350] sm:$0xff] %v349
    %s352 = scalar_lea.vmem [#allocation2], 8
    %v353 = vld [vmem:[%s352] sm:$0xff]
    %s354 = sadd.s32 8, 16
    %s355 = scalar_lea.vmem [#allocation2], %s354
    %v356 = vld [vmem:[%s355] sm:$0xff]
    %s357 = sadd.s32 8, 32
    %s358 = scalar_lea.vmem [#allocation2], %s357
    %v359 = vld [vmem:[%s358] sm:$0xff]
    %s360 = sadd.s32 8, 48
    %s361 = scalar_lea.vmem [#allocation2], %s360
    %v362 = vld [vmem:[%s361] sm:$0xff]
    %s363 = sadd.s32 8, 64
    %s364 = scalar_lea.vmem [#allocation2], %s363
    %v365 = vld [vmem:[%s364] sm:$0xff]
    %v366 = vmul.f32 %v353, %v184
    %v367 = vmul.f32 %v356, %v186
    %v368 = vadd.f32 %v366, %v367
    %v369 = vmul.f32 %v359, %v189
    %v370 = vadd.f32 %v368, %v369
    %v371 = vmul.f32 %v362, %v192
    %v372 = vadd.f32 %v370, %v371
    %v373 = vmul.f32 %v365, %v195
    %v374 = vadd.f32 %v372, %v373
    %v375 = vadd.f32 %v374, %v198
    %v376 = vtanh.pop %v375
    %v377 = vmul.f32 %v353, %v201
    %v378 = vmul.f32 %v356, %v203
    %v379 = vadd.f32 %v377, %v378
    %v380 = vmul.f32 %v359, %v206
    %v381 = vadd.f32 %v379, %v380
    %v382 = vmul.f32 %v362, %v209
    %v383 = vadd.f32 %v381, %v382
    %v384 = vmul.f32 %v365, %v212
    %v385 = vadd.f32 %v383, %v384
    %v386 = vadd.f32 %v385, %v215
    %v387 = vtanh.pop %v386
    %v388 = vmul.f32 %v353, %v218
    %v389 = vmul.f32 %v356, %v220
    %v390 = vadd.f32 %v388, %v389
    %v391 = vmul.f32 %v359, %v223
    %v392 = vadd.f32 %v390, %v391
    %v393 = vmul.f32 %v362, %v226
    %v394 = vadd.f32 %v392, %v393
    %v395 = vmul.f32 %v365, %v229
    %v396 = vadd.f32 %v394, %v395
    %v397 = vadd.f32 %v396, %v232
    %v398 = vtanh.pop %v397
    %v399 = vmul.f32 %v353, %v235
    %v400 = vmul.f32 %v356, %v237
    %v401 = vadd.f32 %v399, %v400
    %v402 = vmul.f32 %v359, %v240
    %v403 = vadd.f32 %v401, %v402
    %v404 = vmul.f32 %v362, %v243
    %v405 = vadd.f32 %v403, %v404
    %v406 = vmul.f32 %v365, %v246
    %v407 = vadd.f32 %v405, %v406
    %v408 = vadd.f32 %v407, %v249
    %v409 = vtanh.pop %v408
    %v410 = vmul.f32 %v376, %v252
    %v411 = vmul.f32 %v387, %v254
    %v412 = vadd.f32 %v410, %v411
    %v413 = vmul.f32 %v398, %v257
    %v414 = vadd.f32 %v412, %v413
    %v415 = vmul.f32 %v409, %v260
    %v416 = vadd.f32 %v414, %v415
    %v417 = vadd.f32 %v416, %v263
    %v418 = vtanh.pop %v417
    %v419 = vmul.f32 %v376, %v266
    %v420 = vmul.f32 %v387, %v268
    %v421 = vadd.f32 %v419, %v420
    %v422 = vmul.f32 %v398, %v271
    %v423 = vadd.f32 %v421, %v422
    %v424 = vmul.f32 %v409, %v274
    %v425 = vadd.f32 %v423, %v424
    %v426 = vadd.f32 %v425, %v277
    %v427 = vtanh.pop %v426
    %v428 = vmul.f32 %v376, %v280
    %v429 = vmul.f32 %v387, %v282
    %v430 = vadd.f32 %v428, %v429
    %v431 = vmul.f32 %v398, %v285
    %v432 = vadd.f32 %v430, %v431
    %v433 = vmul.f32 %v409, %v288
    %v434 = vadd.f32 %v432, %v433
    %v435 = vadd.f32 %v434, %v291
    %v436 = vtanh.pop %v435
    %v437 = vmul.f32 %v376, %v294
    %v438 = vmul.f32 %v387, %v296
    %v439 = vadd.f32 %v437, %v438
    %v440 = vmul.f32 %v398, %v299
    %v441 = vadd.f32 %v439, %v440
    %v442 = vmul.f32 %v409, %v302
    %v443 = vadd.f32 %v441, %v442
    %v444 = vadd.f32 %v443, %v305
    %v445 = vtanh.pop %v444
    %v446 = vmul.f32 %v418, %v308
    %v447 = vmul.f32 %v427, %v310
    %v448 = vadd.f32 %v446, %v447
    %v449 = vmul.f32 %v436, %v313
    %v450 = vadd.f32 %v448, %v449
    %v451 = vmul.f32 %v445, %v316
    %v452 = vadd.f32 %v450, %v451
    %v453 = vadd.f32 %v452, %v319
    %s454 = scalar_lea.vmem [#allocation15], 8
    %455 = vst [vmem:[%s454] sm:$0xff] %v453
    %v456 = vmul.f32 %v418, %v322
    %v457 = vmul.f32 %v427, %v324
    %v458 = vadd.f32 %v456, %v457
    %v459 = vmul.f32 %v436, %v327
    %v460 = vadd.f32 %v458, %v459
    %v461 = vmul.f32 %v445, %v330
    %v462 = vadd.f32 %v460, %v461
    %v463 = vadd.f32 %v462, %v333
    %s464 = scalar_lea.vmem [#allocation15], %s354
    %465 = vst [vmem:[%s464] sm:$0xff] %v463
    %v466 = vmul.f32 %v418, %v337
    %v467 = vmul.f32 %v427, %v339
    %v468 = vadd.f32 %v466, %v467
    %v469 = vmul.f32 %v436, %v342
    %v470 = vadd.f32 %v468, %v469
    %v471 = vmul.f32 %v445, %v345
    %v472 = vadd.f32 %v470, %v471
    %v473 = vadd.f32 %v472, %v348
    %s474 = scalar_lea.vmem [#allocation15], %s357
    %475 = vst [vmem:[%s474] sm:$0xff] %v473
    // Predicated region
    $region58: #{tpu_custom_call.1} parent=1 // pred_check
      _
    $region59: #{tpu_custom_call.1} parent=1 // pred_check_branch
      %477 = sbr.rel (0) target = $region61
    $region60: #{tpu_custom_call.1} parent=1 // pred_region
      %s479 = ssub.s32 768, 768
      %480 = vsyncadd [#allocation4], %s479
      %s481 = sshll.u32 [#allocation15], 4
      %s482 = int_to_ptr.vmem [resolvable:$true] %s481
      %487 = dma.vmem_to_hbm [thread:$0]  %s482, 768, %s7, [#allocation4], 128, 128, 8
    $region61: #{tpu_custom_call.1} parent=1 // pred_fallthru
      _
    // Predicated region
    $region62: #{tpu_custom_call.1} parent=1 // pred_check
      _
    $region63: #{tpu_custom_call.1} parent=1 // pred_check_branch
      %489 = sbr.rel (0) target = $region65
    $region64: #{tpu_custom_call.1} parent=1 // pred_region
      %490 = dma.done [#allocation4], 768
    $region65: #{tpu_custom_call.1} parent=1 // pred_fallthru
      _
    %491 = vsyncpa [#allocation3], 1
    %492 = vsyncpa [#allocation4], 1
    %493 = vsyncpa [#allocation5], 1
    %494 = vsyncpa [#allocation8], 1
    %495 = vsyncpa [#allocation11], 1
    %496 = vsyncpa [#allocation14], 1

</llo_original>
